<compile_context>
chip_gen: v7x
topology: tpu7x:2x2x1
jax: 0.10.0
libtpu: 0.0.40
codegen_flags: <defaults>
</compile_context>

<pallas_src>
import jax
import jax.numpy as jnp
from jax.experimental import pallas as pl
from jax.experimental.pallas import tpu as pltpu

IN_F, H1, H2, OUT_F = 4, 64, 32, 1


def _round_up(n, m):
    return (n + m - 1) // m * m


def mlp_kernel(x_ref, w1_ref, b1_ref, w2_ref, b2_ref, w3_ref, b3_ref, out_ref):
    # x_ref: (4, BT) -- batch lives on the lane axis.
    x = x_ref[...]
    w1 = w1_ref[...]                                    # (64, 4)

    # ---- Layer 1 (K=4): broadcast multiply-adds on the VPU (skip the MXU) ----
    acc = w1[:, 0:1] * x[0:1, :]                        # (64, BT)
    for k in range(1, IN_F):                            # static, unrolled at trace time
        acc = acc + w1[:, k:k + 1] * x[k:k + 1, :]
    h1 = jnp.tanh(acc + b1_ref[...])                    # bias (64,1) broadcasts over lanes

    # ---- Layer 2: (32,64) @ (64,BT) on the MXU, f32 accumulation ----
    h2 = jnp.dot(w2_ref[...], h1, preferred_element_type=jnp.float32)
    h2 = jnp.tanh(h2 + b2_ref[...])                     # (32, BT)

    # ---- Layer 3: (1,32) @ (32,BT) -> lane-dense (1, BT) output row ----
    out = jnp.dot(w3_ref[...], h2, preferred_element_type=jnp.float32)
    out_ref[...] = (out + b3_ref[0]).astype(out_ref.dtype)


def student_wavefunction_nn_cols(x_t, params, *, bt=4096):
    """Preferred entry point: x_t is (IN_F, B) feature-major (batch on the last axis),
    so no host-side transpose is needed.  Returns (OUT_F, B)."""
    assert bt % 128 == 0, "bt must be a multiple of 128 (lane width)"
    w1, b1, w2, b2, w3, b3 = params                     # PyTorch layout: w (out,in)
    B = x_t.shape[1]

    # Tile width: multiple of 128; don't pad a tiny batch up to a huge tile, and split
    # into >=2 grid steps when there is enough work so v7x megacore uses both TCs.
    b128 = _round_up(B, 128)
    bt_eff = min(bt, max(128, _round_up(pl.cdiv(b128, 2), 128)))
    n_tiles = pl.cdiv(B, bt_eff)
    b_pad = n_tiles * bt_eff

    x_t = x_t.astype(jnp.float32)
    if b_pad != B:
        x_t = jnp.pad(x_t, ((0, 0), (0, b_pad - B)))    # lane-axis pad only when needed

    # Per-step VMEM estimate (f32): double-buffered x/out blocks (padded to 8 sublanes)
    # plus the (64,bt)/(32,bt) activation temps and slack.  Only raise the scoped VMEM
    # limit when a very large bt would exceed the tightest default (v5e 16 MiB).
    vmem_need = 4 * bt_eff * (2 * 8 + 2 * 8 + H1 + H2 + 16)
    cp_kwargs = dict(dimension_semantics=("parallel",))
    if vmem_need > 12 * 1024 * 1024:
        cp_kwargs["vmem_limit_bytes"] = min(2 * vmem_need, 100 * 1024 * 1024)

    flops = 2 * B * (IN_F * H1 + H1 * H2 + H2 * OUT_F)
    bytes_accessed = 4 * (
        B * (IN_F + OUT_F)                                       # x in, y out
        + IN_F * H1 + H1 + H1 * H2 + H2 + H2 * OUT_F + OUT_F     # params
    )

    # Weights/biases: whole arrays resident in VMEM for the whole grid (no per-step
    # re-DMA, no double buffering).  b3 is a scalar -> SMEM.
    vmem_full = pl.BlockSpec(memory_space=pltpu.MemorySpace.VMEM)

    out_t = pl.pallas_call(
        mlp_kernel,
        out_shape=jax.ShapeDtypeStruct((OUT_F, b_pad), jnp.float32),
        grid=(n_tiles,),
        in_specs=[
            pl.BlockSpec((IN_F, bt_eff), lambda i: (0, i)),      # x tile, batch on lanes
            vmem_full,                                           # w1 (64,4)
            vmem_full,                                           # b1 (64,1)
            vmem_full,                                           # w2 (32,64)
            vmem_full,                                           # b2 (32,1)
            vmem_full,                                           # w3 (1,32)
            pl.BlockSpec(memory_space=pltpu.MemorySpace.SMEM),   # b3 scalar (1,)
        ],
        out_specs=pl.BlockSpec((OUT_F, bt_eff), lambda i: (0, i)),
        compiler_params=pltpu.CompilerParams(**cp_kwargs),
        cost_estimate=pl.CostEstimate(
            flops=flops,
            transcendentals=B * (H1 + H2),
            bytes_accessed=bytes_accessed),
    )(x_t, w1, b1, w2, b2, w3, b3)

    return out_t[:, :B]                                  # (1, B)


def student_wavefunction_nn(x, params, *, bt=4096):
    """PyTorch-layout wrapper: x (B, 4) float -> (B, 1) float32.
    Does exactly one explicit transpose; callers that can produce x in (4, B) layout
    should use `student_wavefunction_nn_cols` and avoid it entirely."""
    B = x.shape[0]
    out_t = student_wavefunction_nn_cols(x.astype(jnp.float32).T, params, bt=bt)
    return out_t.reshape(B, OUT_F)                       # (1,B) -> (B,1) is a free reshape


def init_params(key):
    """Deterministic init mimicking PyTorch nn.Linear default (U[-1/sqrt(fan_in), ...]),
    stored in PyTorch layout: weight (out_features, in_features)."""
    def linear(key, fan_in, fan_out):
        kw, kb = jax.random.split(key)
        bound = 1.0 / (fan_in ** 0.5)
        w = jax.random.uniform(kw, (fan_out, fan_in), jnp.float32, -bound, bound)
        b = jax.random.uniform(kb, (fan_out,), jnp.float32, -bound, bound)
        return w, b

    k1, k2, k3 = jax.random.split(key, 3)
    w1, b1 = linear(k1, IN_F, H1)
    w2, b2 = linear(k2, H1, H2)
    w3, b3 = linear(k3, H2, OUT_F)
    return (w1, b1.reshape(H1, 1), w2, b2.reshape(H2, 1), w3, b3)   # b3 stays (1,)


def reference_forward(x, params):
    """Plain-JAX reference of the PyTorch module's forward."""
    w1, b1, w2, b2, w3, b3 = params
    # Layer 1 as explicit f32 multiply-adds (same math path as the kernel's VPU FMAs).
    pre1 = (x[:, :, None] * w1.T[None, :, :]).sum(axis=1) + b1[:, 0]
    h1 = jnp.tanh(pre1)
    h2 = jnp.tanh(h1 @ w2.T + b2[:, 0])
    return h2 @ w3.T + b3


if __name__ == "__main__":
    key = jax.random.PRNGKey(0)
    k_params, k_x = jax.random.split(key)

    params = init_params(k_params)
    x = jax.random.normal(k_x, (8, 4), jnp.float32)      # batch=8, in_features=4

    out = jax.block_until_ready(student_wavefunction_nn(x, params))
    ref = reference_forward(x, params)

    assert out.shape == (8, 1), out.shape
    assert jnp.allclose(out, ref, atol=1e-5, rtol=1e-5), (out, ref)

    print("KERNEL_OK")
</pallas_src>

<mosaic_0001>
module attributes {stable_mosaic.version = 11 : i64} {
  func.func @mlp_kernel(%arg0: i32, %arg1: memref<4x128xf32, #tpu.memory_space<vmem>>, %arg2: memref<64x4xf32, #tpu.memory_space<vmem>>, %arg3: memref<64x1xf32, #tpu.memory_space<vmem>>, %arg4: memref<32x64xf32, #tpu.memory_space<vmem>>, %arg5: memref<32x1xf32, #tpu.memory_space<vmem>>, %arg6: memref<1x32xf32, #tpu.memory_space<vmem>>, %arg7: memref<1xf32, #tpu.memory_space<smem>>, %arg8: memref<1x128xf32, #tpu.memory_space<vmem>>) attributes {dimension_semantics = [#tpu.dimension_semantics<parallel>], iteration_bounds = array<i64: 1>, scalar_prefetch = 0 : i64, scratch_operands = 0 : i64, tpu.core_type = #tpu.core_type<tc>, window_params = [{transform_indices = @transform_0, window_bounds = array<i64: 4, 128>}, {pipeline_mode = #tpu.pipeline_mode<synchronous>, transform_indices = @transform_1, window_bounds = array<i64: 64, 4>}, {pipeline_mode = #tpu.pipeline_mode<synchronous>, transform_indices = @transform_2, window_bounds = array<i64: 64, 1>}, {pipeline_mode = #tpu.pipeline_mode<synchronous>, transform_indices = @transform_3, window_bounds = array<i64: 32, 64>}, {pipeline_mode = #tpu.pipeline_mode<synchronous>, transform_indices = @transform_4, window_bounds = array<i64: 32, 1>}, {pipeline_mode = #tpu.pipeline_mode<synchronous>, transform_indices = @transform_5, window_bounds = array<i64: 1, 32>}, {transform_indices = @transform_6, window_bounds = array<i64: 1>}, {transform_indices = @transform_7, window_bounds = array<i64: 1, 128>}]} {
    %c0 = arith.constant 0 : index
    %c0_0 = arith.constant 0 : index
    %0 = vector.load %arg1[%c0, %c0_0] : memref<4x128xf32, #tpu.memory_space<vmem>>, vector<4x128xf32>
    %c0_1 = arith.constant 0 : index
    %c0_2 = arith.constant 0 : index
    %1 = vector.load %arg2[%c0_1, %c0_2] : memref<64x4xf32, #tpu.memory_space<vmem>>, vector<64x4xf32>
    %2 = vector.extract_strided_slice %1 {offsets = [0, 0], sizes = [64, 1], strides = [1, 1]} : vector<64x4xf32> to vector<64x1xf32>
    %3 = vector.extract_strided_slice %0 {offsets = [0, 0], sizes = [1, 128], strides = [1, 1]} : vector<4x128xf32> to vector<1x128xf32>
    %4 = vector.broadcast %2 : vector<64x1xf32> to vector<64x128xf32>
    %5 = vector.broadcast %3 : vector<1x128xf32> to vector<64x128xf32>
    %6 = arith.mulf %4, %5 : vector<64x128xf32>
    %7 = vector.extract_strided_slice %1 {offsets = [0, 1], sizes = [64, 1], strides = [1, 1]} : vector<64x4xf32> to vector<64x1xf32>
    %8 = vector.extract_strided_slice %0 {offsets = [1, 0], sizes = [1, 128], strides = [1, 1]} : vector<4x128xf32> to vector<1x128xf32>
    %9 = vector.broadcast %7 : vector<64x1xf32> to vector<64x128xf32>
    %10 = vector.broadcast %8 : vector<1x128xf32> to vector<64x128xf32>
    %11 = arith.mulf %9, %10 : vector<64x128xf32>
    %12 = arith.addf %6, %11 : vector<64x128xf32>
    %13 = vector.extract_strided_slice %1 {offsets = [0, 2], sizes = [64, 1], strides = [1, 1]} : vector<64x4xf32> to vector<64x1xf32>
    %14 = vector.extract_strided_slice %0 {offsets = [2, 0], sizes = [1, 128], strides = [1, 1]} : vector<4x128xf32> to vector<1x128xf32>
    %15 = vector.broadcast %13 : vector<64x1xf32> to vector<64x128xf32>
    %16 = vector.broadcast %14 : vector<1x128xf32> to vector<64x128xf32>
    %17 = arith.mulf %15, %16 : vector<64x128xf32>
    %18 = arith.addf %12, %17 : vector<64x128xf32>
    %19 = vector.extract_strided_slice %1 {offsets = [0, 3], sizes = [64, 1], strides = [1, 1]} : vector<64x4xf32> to vector<64x1xf32>
    %20 = vector.extract_strided_slice %0 {offsets = [3, 0], sizes = [1, 128], strides = [1, 1]} : vector<4x128xf32> to vector<1x128xf32>
    %21 = vector.broadcast %19 : vector<64x1xf32> to vector<64x128xf32>
    %22 = vector.broadcast %20 : vector<1x128xf32> to vector<64x128xf32>
    %23 = arith.mulf %21, %22 : vector<64x128xf32>
    %24 = arith.addf %18, %23 : vector<64x128xf32>
    %c0_3 = arith.constant 0 : index
    %c0_4 = arith.constant 0 : index
    %25 = vector.load %arg3[%c0_3, %c0_4] : memref<64x1xf32, #tpu.memory_space<vmem>>, vector<64x1xf32>
    %26 = vector.broadcast %25 : vector<64x1xf32> to vector<64x128xf32>
    %27 = arith.addf %24, %26 : vector<64x128xf32>
    %28 = math.tanh %27 : vector<64x128xf32>
    %c0_5 = arith.constant 0 : index
    %c0_6 = arith.constant 0 : index
    %29 = vector.load %arg4[%c0_5, %c0_6] : memref<32x64xf32, #tpu.memory_space<vmem>>, vector<32x64xf32>
    %cst = arith.constant dense<0.000000e+00> : vector<32x128xf32>
    %30 = tpu.matmul %29, %28, %cst {dimension_numbers = #tpu.dot_dimension_numbers<[1], [0], [0], [1], [0, 0, 1, 1], [], []>} : vector<32x64xf32>, vector<64x128xf32>, vector<32x128xf32> -> vector<32x128xf32>
    %c0_7 = arith.constant 0 : index
    %c0_8 = arith.constant 0 : index
    %31 = vector.load %arg5[%c0_7, %c0_8] : memref<32x1xf32, #tpu.memory_space<vmem>>, vector<32x1xf32>
    %32 = vector.broadcast %31 : vector<32x1xf32> to vector<32x128xf32>
    %33 = arith.addf %30, %32 : vector<32x128xf32>
    %34 = math.tanh %33 : vector<32x128xf32>
    %c0_9 = arith.constant 0 : index
    %c0_10 = arith.constant 0 : index
    %35 = vector.load %arg6[%c0_9, %c0_10] : memref<1x32xf32, #tpu.memory_space<vmem>>, vector<1x32xf32>
    %cst_11 = arith.constant dense<0.000000e+00> : vector<1x128xf32>
    %36 = tpu.matmul %35, %34, %cst_11 {dimension_numbers = #tpu.dot_dimension_numbers<[1], [0], [0], [1], [0, 0, 1, 1], [], []>} : vector<1x32xf32>, vector<32x128xf32>, vector<1x128xf32> -> vector<1x128xf32>
    %c0_12 = arith.constant 0 : index
    %37 = memref.load %arg7[%c0_12] : memref<1xf32, #tpu.memory_space<smem>>
    %38 = vector.broadcast %37 : f32 to vector<1x128xf32>
    %39 = arith.addf %36, %38 : vector<1x128xf32>
    %c0_13 = arith.constant 0 : index
    %c0_14 = arith.constant 0 : index
    %40 = vector.load %arg8[%c0_13, %c0_14] : memref<1x128xf32, #tpu.memory_space<vmem>>, vector<1x128xf32>
    tpu.vector_store %arg8[%c0_13, %c0_14], %39 {strides = array<i32>} : memref<1x128xf32, #tpu.memory_space<vmem>>, vector<1x128xf32>,
    return
  }
  func.func @transform_0(%arg0: i32) -> (i32, i32) {
    %c0_i32 = arith.constant 0 : i32
    %c0_i32_0 = arith.constant 0 : i32
    return %c0_i32, %arg0 : i32, i32
  }
  func.func @transform_1(%arg0: i32) -> (i32, i32) {
    %c0_i32 = arith.constant 0 : i32
    %c0_i32_0 = arith.constant 0 : i32
    %c0_i32_1 = arith.constant 0 : i32
    return %c0_i32, %c0_i32_0 : i32, i32
  }
  func.func @transform_2(%arg0: i32) -> (i32, i32) {
    %c0_i32 = arith.constant 0 : i32
    %c0_i32_0 = arith.constant 0 : i32
    %c0_i32_1 = arith.constant 0 : i32
    return %c0_i32, %c0_i32_0 : i32, i32
  }
  func.func @transform_3(%arg0: i32) -> (i32, i32) {
    %c0_i32 = arith.constant 0 : i32
    %c0_i32_0 = arith.constant 0 : i32
    %c0_i32_1 = arith.constant 0 : i32
    return %c0_i32, %c0_i32_0 : i32, i32
  }
  func.func @transform_4(%arg0: i32) -> (i32, i32) {
    %c0_i32 = arith.constant 0 : i32
    %c0_i32_0 = arith.constant 0 : i32
    %c0_i32_1 = arith.constant 0 : i32
    return %c0_i32, %c0_i32_0 : i32, i32
  }
  func.func @transform_5(%arg0: i32) -> (i32, i32) {
    %c0_i32 = arith.constant 0 : i32
    %c0_i32_0 = arith.constant 0 : i32
    %c0_i32_1 = arith.constant 0 : i32
    return %c0_i32, %c0_i32_0 : i32, i32
  }
  func.func @transform_6(%arg0: i32) -> i32 {
    %c0_i32 = arith.constant 0 : i32
    %c0_i32_0 = arith.constant 0 : i32
    return %c0_i32 : i32
  }
  func.func @transform_7(%arg0: i32) -> (i32, i32) {
    %c0_i32 = arith.constant 0 : i32
    %c0_i32_0 = arith.constant 0 : i32
    return %c0_i32, %arg0 : i32, i32
  }
}

</mosaic_0001>

<llo_original>
// kernel: tpu_custom_call.1
$region0: #{tpu_custom_call.1}
  #allocation0 [shape = 'u32[]', space=smem, size = 0x4, offset = 0x4, fixed_abs, tag = 'smem constant byte address 0x4 - core index']
  #allocation1 [shape = 'u32[144,128]{1,0:T(1,128)}', space=vmem, size = 0x12000, scoped, tag = 'internal scratch']
  #allocation2 [shape = 'f32[1]{0:T(128)S(6)}', space=smem, size = 0x200, scoped, tag = 'scoped memory for tpu_custom_call.1']
  %s0 = inlined_call_operand.vmem [shape: f32[4,128], index: 0, kind: input, shape index: {}]
  %s1 = inlined_call_operand.vmem [shape: f32[64,4], index: 1, kind: input, shape index: {}]
  %s2 = inlined_call_operand.vmem [shape: f32[64,1], index: 2, kind: input, shape index: {}]
  %s3 = inlined_call_operand.vmem [shape: f32[32,64], index: 3, kind: input, shape index: {}]
  %s4 = inlined_call_operand.vmem [shape: f32[32,1], index: 4, kind: input, shape index: {}]
  %s5 = inlined_call_operand.vmem [shape: f32[1,32], index: 5, kind: input, shape index: {}]
  %s6 = inlined_call_operand.<no memory space> [shape: f32[1], index: 6, kind: input, shape index: {}]
  %s7 = inlined_call_operand.hbm [shape: f32[1,128], index: 7, kind: output, shape index: {}]
  %s8 = sld [smem:[#allocation0]]
  $region38: #{tpu_custom_call.1} parent=0
    _
  %s10 = ssub.s32 1, %s8
  %s11 = scalar_select 0, %s10, %s8
  %12 = sst [smem:[#allocation2]] %s6
  $region1: #{tpu_custom_call.1} parent=0
    #allocation3 [shape = 'u8[512]{0}', space=vmem, size = 0x400, scoped, tag = 'output window, operand 0, single buffered']
    #allocation4 [shape = 's32[1]{0}', space=sflag, size = 0x4, scoped, tag = 'scoped memory for tpu_custom_call.1']
    %13 = vsyncpa [#allocation4], 0
    // Predicated region
    $region2: #{tpu_custom_call.1} parent=1 // pred_check
      _
    $region3: #{tpu_custom_call.1} parent=1 // pred_check_branch
      %15 = sbr.rel (0) target = $region5
    $region4: #{tpu_custom_call.1} parent=1 // pred_region
      _
    $region5: #{tpu_custom_call.1} parent=1 // pred_fallthru
      _
    // Predicated region
    $region6: #{tpu_custom_call.1} parent=1 // pred_check
      _
    $region7: #{tpu_custom_call.1} parent=1 // pred_check_branch
      %17 = sbr.rel (0) target = $region9
    $region8: #{tpu_custom_call.1} parent=1 // pred_region
      _
    $region9: #{tpu_custom_call.1} parent=1 // pred_fallthru
      _
    // Predicated region
    $region10: #{tpu_custom_call.1} parent=1 // pred_check
      _
    $region11: #{tpu_custom_call.1} parent=1 // pred_check_branch
      %19 = sbr.rel (0) target = $region13
    $region12: #{tpu_custom_call.1} parent=1 // pred_region
      _
    $region13: #{tpu_custom_call.1} parent=1 // pred_fallthru
      _
    // Predicated region
    $region14: #{tpu_custom_call.1} parent=1 // pred_check
      _
    $region15: #{tpu_custom_call.1} parent=1 // pred_check_branch
      %21 = sbr.rel (0) target = $region17
    $region16: #{tpu_custom_call.1} parent=1 // pred_region
      _
    $region17: #{tpu_custom_call.1} parent=1 // pred_fallthru
      _
    // Predicated region
    $region18: #{tpu_custom_call.1} parent=1 // pred_check
      _
    $region19: #{tpu_custom_call.1} parent=1 // pred_check_branch
      %23 = sbr.rel (0) target = $region21
    $region20: #{tpu_custom_call.1} parent=1 // pred_region
      _
    $region21: #{tpu_custom_call.1} parent=1 // pred_fallthru
      _
    // Predicated region
    $region22: #{tpu_custom_call.1} parent=1 // pred_check
      _
    $region23: #{tpu_custom_call.1} parent=1 // pred_check_branch
      %25 = sbr.rel (0) target = $region25
    $region24: #{tpu_custom_call.1} parent=1 // pred_region
      _
    $region25: #{tpu_custom_call.1} parent=1 // pred_fallthru
      _
    // Predicated region
    $region26: #{tpu_custom_call.1} parent=1 // pred_check
      _
    $region27: #{tpu_custom_call.1} parent=1 // pred_check_branch
      %27 = sbr.rel (0) target = $region29
    $region28: #{tpu_custom_call.1} parent=1 // pred_region
      _
    $region29: #{tpu_custom_call.1} parent=1 // pred_fallthru
      _
    %v28 = vld [vmem:[%s0] sm:$0xf]
    %v29 = vld [vmem:[%s1] sm:$0xff]
    %v30 = vld [vmem:[%s1 + $0x8] sm:$0xff]
    %v31 = vld [vmem:[%s1 + $0x10] sm:$0xff]
    %v32 = vld [vmem:[%s1 + $0x18] sm:$0xff]
    %v33 = vld [vmem:[%s1 + $0x20] sm:$0xff]
    %v34 = vld [vmem:[%s1 + $0x28] sm:$0xff]
    %v35 = vld [vmem:[%s1 + $0x30] sm:$0xff]
    %v36 = vld [vmem:[%s1 + $0x38] sm:$0xff]
    %38 = vset.pattern.permute.xlu0 0
    %39 = vperm.xlu0 %38, %v29
    %v40 = vpop.permute.xlu0 %39
    %43 = vset.pattern.permute.xlu0 0
    %44 = vperm.xlu0 %43, %v30
    %v45 = vpop.permute.xlu0 %44
    %48 = vset.pattern.permute.xlu0 0
    %49 = vperm.xlu0 %48, %v31
    %v50 = vpop.permute.xlu0 %49
    %53 = vset.pattern.permute.xlu0 0
    %54 = vperm.xlu0 %53, %v32
    %v55 = vpop.permute.xlu0 %54
    %58 = vset.pattern.permute.xlu0 0
    %59 = vperm.xlu0 %58, %v33
    %v60 = vpop.permute.xlu0 %59
    %63 = vset.pattern.permute.xlu0 0
    %64 = vperm.xlu0 %63, %v34
    %v65 = vpop.permute.xlu0 %64
    %68 = vset.pattern.permute.xlu0 0
    %69 = vperm.xlu0 %68, %v35
    %v70 = vpop.permute.xlu0 %69
    %73 = vset.pattern.permute.xlu0 0
    %74 = vperm.xlu0 %73, %v36
    %v75 = vpop.permute.xlu0 %74
    %v77 = vlaneseq
    %v78 = vshrl.u32 %v77, 7
    %v79 = vsub.s32 0, %v78
    %v80 = vrot.slane %v28, %v79
    %v81 = vmul.f32 %v40, %v80
    %v82 = vmul.f32 %v45, %v80
    %v83 = vmul.f32 %v50, %v80
    %v84 = vmul.f32 %v55, %v80
    %v85 = vmul.f32 %v60, %v80
    %v86 = vmul.f32 %v65, %v80
    %v87 = vmul.f32 %v70, %v80
    %v88 = vmul.f32 %v75, %v80
    %89 = vset.pattern.permute.xlu0 1
    %90 = vperm.xlu0 %89, %v29
    %v91 = vpop.permute.xlu0 %90
    %93 = vset.pattern.permute.xlu0 1
    %94 = vperm.xlu0 %93, %v30
    %v95 = vpop.permute.xlu0 %94
    %97 = vset.pattern.permute.xlu0 1
    %98 = vperm.xlu0 %97, %v31
    %v99 = vpop.permute.xlu0 %98
    %101 = vset.pattern.permute.xlu0 1
    %102 = vperm.xlu0 %101, %v32
    %v103 = vpop.permute.xlu0 %102
    %105 = vset.pattern.permute.xlu0 1
    %106 = vperm.xlu0 %105, %v33
    %v107 = vpop.permute.xlu0 %106
    %109 = vset.pattern.permute.xlu0 1
    %110 = vperm.xlu0 %109, %v34
    %v111 = vpop.permute.xlu0 %110
    %113 = vset.pattern.permute.xlu0 1
    %114 = vperm.xlu0 %113, %v35
    %v115 = vpop.permute.xlu0 %114
    %117 = vset.pattern.permute.xlu0 1
    %118 = vperm.xlu0 %117, %v36
    %v119 = vpop.permute.xlu0 %118
    %v121 = vlaneseq
    %v122 = vshrl.u32 %v121, 7
    %v123 = vsub.s32 1, %v122
    %v124 = vrot.slane %v28, %v123
    %v125 = vmul.f32 %v91, %v124
    %v126 = vmul.f32 %v95, %v124
    %v127 = vmul.f32 %v99, %v124
    %v128 = vmul.f32 %v103, %v124
    %v129 = vmul.f32 %v107, %v124
    %v130 = vmul.f32 %v111, %v124
    %v131 = vmul.f32 %v115, %v124
    %v132 = vmul.f32 %v119, %v124
    %v133 = vadd.f32 %v81, %v125
    %v134 = vadd.f32 %v82, %v126
    %v135 = vadd.f32 %v83, %v127
    %v136 = vadd.f32 %v84, %v128
    %v137 = vadd.f32 %v85, %v129
    %v138 = vadd.f32 %v86, %v130
    %v139 = vadd.f32 %v87, %v131
    %v140 = vadd.f32 %v88, %v132
    %141 = vset.pattern.permute.xlu0 2
    %142 = vperm.xlu0 %141, %v29
    %v143 = vpop.permute.xlu0 %142
    %145 = vset.pattern.permute.xlu0 2
    %146 = vperm.xlu0 %145, %v30
    %v147 = vpop.permute.xlu0 %146
    %149 = vset.pattern.permute.xlu0 2
    %150 = vperm.xlu0 %149, %v31
    %v151 = vpop.permute.xlu0 %150
    %153 = vset.pattern.permute.xlu0 2
    %154 = vperm.xlu0 %153, %v32
    %v155 = vpop.permute.xlu0 %154
    %157 = vset.pattern.permute.xlu0 2
    %158 = vperm.xlu0 %157, %v33
    %v159 = vpop.permute.xlu0 %158
    %161 = vset.pattern.permute.xlu0 2
    %162 = vperm.xlu0 %161, %v34
    %v163 = vpop.permute.xlu0 %162
    %165 = vset.pattern.permute.xlu0 2
    %166 = vperm.xlu0 %165, %v35
    %v167 = vpop.permute.xlu0 %166
    %169 = vset.pattern.permute.xlu0 2
    %170 = vperm.xlu0 %169, %v36
    %v171 = vpop.permute.xlu0 %170
    %v173 = vlaneseq
    %v174 = vshrl.u32 %v173, 7
    %v175 = vsub.s32 2, %v174
    %v176 = vrot.slane %v28, %v175
    %v177 = vmul.f32 %v143, %v176
    %v178 = vmul.f32 %v147, %v176
    %v179 = vmul.f32 %v151, %v176
    %v180 = vmul.f32 %v155, %v176
    %v181 = vmul.f32 %v159, %v176
    %v182 = vmul.f32 %v163, %v176
    %v183 = vmul.f32 %v167, %v176
    %v184 = vmul.f32 %v171, %v176
    %v185 = vadd.f32 %v133, %v177
    %v186 = vadd.f32 %v134, %v178
    %v187 = vadd.f32 %v135, %v179
    %v188 = vadd.f32 %v136, %v180
    %v189 = vadd.f32 %v137, %v181
    %v190 = vadd.f32 %v138, %v182
    %v191 = vadd.f32 %v139, %v183
    %v192 = vadd.f32 %v140, %v184
    %193 = vset.pattern.permute.xlu0 3
    %194 = vperm.xlu0 %193, %v29
    %v195 = vpop.permute.xlu0 %194
    %197 = vset.pattern.permute.xlu0 3
    %198 = vperm.xlu0 %197, %v30
    %v199 = vpop.permute.xlu0 %198
    %201 = vset.pattern.permute.xlu0 3
    %202 = vperm.xlu0 %201, %v31
    %v203 = vpop.permute.xlu0 %202
    %205 = vset.pattern.permute.xlu0 3
    %206 = vperm.xlu0 %205, %v32
    %v207 = vpop.permute.xlu0 %206
    %209 = vset.pattern.permute.xlu0 3
    %210 = vperm.xlu0 %209, %v33
    %v211 = vpop.permute.xlu0 %210
    %213 = vset.pattern.permute.xlu0 3
    %214 = vperm.xlu0 %213, %v34
    %v215 = vpop.permute.xlu0 %214
    %217 = vset.pattern.permute.xlu0 3
    %218 = vperm.xlu0 %217, %v35
    %v219 = vpop.permute.xlu0 %218
    %221 = vset.pattern.permute.xlu0 3
    %222 = vperm.xlu0 %221, %v36
    %v223 = vpop.permute.xlu0 %222
    %v225 = vlaneseq
    %v226 = vshrl.u32 %v225, 7
    %v227 = vsub.s32 3, %v226
    %v228 = vrot.slane %v28, %v227
    %v229 = vmul.f32 %v195, %v228
    %v230 = vmul.f32 %v199, %v228
    %v231 = vmul.f32 %v203, %v228
    %v232 = vmul.f32 %v207, %v228
    %v233 = vmul.f32 %v211, %v228
    %v234 = vmul.f32 %v215, %v228
    %v235 = vmul.f32 %v219, %v228
    %v236 = vmul.f32 %v223, %v228
    %v237 = vadd.f32 %v185, %v229
    %v238 = vadd.f32 %v186, %v230
    %v239 = vadd.f32 %v187, %v231
    %v240 = vadd.f32 %v188, %v232
    %v241 = vadd.f32 %v189, %v233
    %v242 = vadd.f32 %v190, %v234
    %v243 = vadd.f32 %v191, %v235
    %v244 = vadd.f32 %v192, %v236
    %v245 = vld [vmem:[%s2] sm:$0xff]
    %v246 = vld [vmem:[%s2 + $0x8] sm:$0xff]
    %v247 = vld [vmem:[%s2 + $0x10] sm:$0xff]
    %v248 = vld [vmem:[%s2 + $0x18] sm:$0xff]
    %v249 = vld [vmem:[%s2 + $0x20] sm:$0xff]
    %v250 = vld [vmem:[%s2 + $0x28] sm:$0xff]
    %v251 = vld [vmem:[%s2 + $0x30] sm:$0xff]
    %v252 = vld [vmem:[%s2 + $0x38] sm:$0xff]
    %254 = vset.pattern.permute.xlu0 0
    %255 = vperm.xlu0 %254, %v245
    %v256 = vpop.permute.xlu0 %255
    %259 = vset.pattern.permute.xlu0 0
    %260 = vperm.xlu0 %259, %v246
    %v261 = vpop.permute.xlu0 %260
    %264 = vset.pattern.permute.xlu0 0
    %265 = vperm.xlu0 %264, %v247
    %v266 = vpop.permute.xlu0 %265
    %269 = vset.pattern.permute.xlu0 0
    %270 = vperm.xlu0 %269, %v248
    %v271 = vpop.permute.xlu0 %270
    %274 = vset.pattern.permute.xlu0 0
    %275 = vperm.xlu0 %274, %v249
    %v276 = vpop.permute.xlu0 %275
    %279 = vset.pattern.permute.xlu0 0
    %280 = vperm.xlu0 %279, %v250
    %v281 = vpop.permute.xlu0 %280
    %284 = vset.pattern.permute.xlu0 0
    %285 = vperm.xlu0 %284, %v251
    %v286 = vpop.permute.xlu0 %285
    %289 = vset.pattern.permute.xlu0 0
    %290 = vperm.xlu0 %289, %v252
    %v291 = vpop.permute.xlu0 %290
    %v293 = vadd.f32 %v237, %v256
    %v294 = vadd.f32 %v238, %v261
    %v295 = vadd.f32 %v239, %v266
    %v296 = vadd.f32 %v240, %v271
    %v297 = vadd.f32 %v241, %v276
    %v298 = vadd.f32 %v242, %v281
    %v299 = vadd.f32 %v243, %v286
    %v300 = vadd.f32 %v244, %v291
    %v301 = vtanh.pop %v293
    %v302 = vtanh.pop %v294
    %v303 = vtanh.pop %v295
    %v304 = vtanh.pop %v296
    %v305 = vtanh.pop %v297
    %v306 = vtanh.pop %v298
    %v307 = vtanh.pop %v299
    %v308 = vtanh.pop %v300
    %v309 = vld [vmem:[%s3] sm:$0xff]
    %v310 = vld [vmem:[%s3 + $0x8] sm:$0xff]
    %v311 = vld [vmem:[%s3 + $0x10] sm:$0xff]
    %v312 = vld [vmem:[%s3 + $0x18] sm:$0xff]
    %v313 = vld [vmem:[%s4] sm:$0xff]
    %v314 = vld [vmem:[%s4 + $0x8] sm:$0xff]
    %v315 = vld [vmem:[%s4 + $0x10] sm:$0xff]
    %v316 = vld [vmem:[%s4 + $0x18] sm:$0xff]
    %318 = vset.pattern.permute.xlu0 0
    %319 = vperm.xlu0 %318, %v313
    %v320 = vpop.permute.xlu0 %319
    %323 = vset.pattern.permute.xlu0 0
    %324 = vperm.xlu0 %323, %v314
    %v325 = vpop.permute.xlu0 %324
    %328 = vset.pattern.permute.xlu0 0
    %329 = vperm.xlu0 %328, %v315
    %v330 = vpop.permute.xlu0 %329
    %333 = vset.pattern.permute.xlu0 0
    %334 = vperm.xlu0 %333, %v316
    %v335 = vpop.permute.xlu0 %334
    %vm337 = vcmask 523264
    %v339 = vsel %vm337, %v309, 0
    %v342 = vsel %vm337, %v310, 0
    %v345 = vsel %vm337, %v311, 0
    %v348 = vsel %vm337, %v312, 0
    %350 = vmatprep.subr.mxu0 0.0
    %351 = vmatpush1.msra.mxu0 %v301
    %352 = vmatprep.subr.mxu0 0.0
    %353 = vmatpush1.msra.mxu0 %v302
    %354 = vmatprep.subr.mxu0 0.0
    %355 = vmatpush1.msra.mxu0 %v303
    %356 = vmatprep.subr.mxu0 0.0
    %357 = vmatpush1.msra.mxu0 %v304
    %358 = vmatprep.subr.mxu0 0.0
    %359 = vmatpush1.msra.mxu0 %v305
    %360 = vmatprep.subr.mxu0 0.0
    %361 = vmatpush1.msra.mxu0 %v306
    %362 = vmatprep.subr.mxu0 0.0
    %363 = vmatpush1.msra.mxu0 %v307
    %364 = vmatprep.subr.mxu0 0.0
    %365 = vmatpush1.msra.mxu0 %v308
    %366 = vmatprep.subr.mxu0 0.0
    %367 = vmatpush1.msra.mxu0 0.0
    %368 = vmatprep.subr.mxu0 0.0
    %369 = vmatpush1.msra.mxu0 0.0
    %370 = vmatprep.subr.mxu0 0.0
    %371 = vmatpush1.msra.mxu0 0.0
    %372 = vmatprep.subr.mxu0 0.0
    %373 = vmatpush1.msra.mxu0 0.0
    %374 = vmatprep.subr.mxu0 0.0
    %375 = vmatpush1.msra.mxu0 0.0
    %376 = vmatprep.subr.mxu0 0.0
    %377 = vmatpush1.msra.mxu0 0.0
    %378 = vmatprep.subr.mxu0 0.0
    %379 = vmatpush1.msra.mxu0 0.0
    %380 = vmatprep.subr.mxu0 0.0
    %381 = vmatpush1.msra.mxu0 0.0
    %382 = vmatprep.subr.mxu0 0.0
    %383 = vmatpush1.msra.mxu0 0.0
    %384 = vmatprep.subr.mxu0 0.0
    %385 = vmatpush1.msra.mxu0 0.0
    %386 = vmatprep.subr.mxu0 0.0
    %387 = vmatpush1.msra.mxu0 0.0
    %388 = vmatprep.subr.mxu0 0.0
    %389 = vmatpush1.msra.mxu0 0.0
    %390 = vmatprep.subr.mxu0 0.0
    %391 = vmatpush1.msra.mxu0 0.0
    %392 = vmatprep.subr.mxu0 0.0
    %393 = vmatpush1.msra.mxu0 0.0
    %394 = vmatprep.subr.mxu0 0.0
    %395 = vmatpush1.msra.mxu0 0.0
    %396 = vmatprep.subr.mxu0 0.0
    %397 = vmatpush1.msra.mxu0 0.0
    %398 = vmatprep.subr.mxu0 0.0
    %399 = vmatpush1.msra.mxu0 0.0
    %400 = vmatprep.subr.mxu0 0.0
    %401 = vmatpush1.msra.mxu0 0.0
    %402 = vmatprep.subr.mxu0 0.0
    %403 = vmatpush1.msra.mxu0 0.0
    %404 = vmatprep.subr.mxu0 0.0
    %405 = vmatpush1.msra.mxu0 0.0
    %406 = vmatprep.subr.mxu0 0.0
    %407 = vmatpush1.msra.mxu0 0.0
    %408 = vmatprep.subr.mxu0 0.0
    %409 = vmatpush1.msra.mxu0 0.0
    %410 = vmatprep.subr.mxu0 0.0
    %411 = vmatpush1.msra.mxu0 0.0
    %412 = vmatprep.subr.mxu0 0.0
    %413 = vmatpush1.msra.mxu0 0.0
    %414 = vmatprep.mubr.f32.mxu0 0.0
    %415 = vmatmul.mubr.f32.gmra.mrb[0].mxu0 %v339
    %v416 = vpop.f32.mrb[0].mxu0
    %v417 = vadd.f32 %v320, %v416
    %v418 = vpop.f32.mrb[0].mxu0
    %419 = vmatprep.mubr.f32.mxu0 0.0
    %420 = vmatmul.mubr.f32.gmra.mrb[0].mxu0 %v342
    %v421 = vpop.f32.mrb[0].mxu0
    %v422 = vadd.f32 %v325, %v421
    %v423 = vpop.f32.mrb[0].mxu0
    %424 = vmatprep.mubr.f32.mxu0 0.0
    %425 = vmatmul.mubr.f32.gmra.mrb[0].mxu0 %v345
    %v426 = vpop.f32.mrb[0].mxu0
    %v427 = vadd.f32 %v330, %v426
    %v428 = vpop.f32.mrb[0].mxu0
    %429 = vmatprep.mubr.f32.mxu0 0.0
    %430 = vmatmul.mubr.f32.gmra.mrb[0].mxu0 %v348
    %v431 = vpop.f32.mrb[0].mxu0
    %v432 = vadd.f32 %v335, %v431
    %v433 = vpop.f32.mrb[0].mxu0
    %434 = vdwg.mxu0
    %v435 = vtanh.pop %v417
    %v436 = vtanh.pop %v422
    %v437 = vtanh.pop %v427
    %v438 = vtanh.pop %v432
    %v439 = vld [vmem:[%s5] sm:$0x1]
    %s440 = sld [smem:[#allocation2]]
    %v441 = vstv %s440
    %vm442 = vcmask 261120
    %v444 = vsel %vm442, %v439, 0
    %446 = vmatprep.subr.mxu0 0.0
    %447 = vmatpush1.msra.mxu0 %v435
    %448 = vmatprep.subr.mxu0 0.0
    %449 = vmatpush1.msra.mxu0 %v436
    %450 = vmatprep.subr.mxu0 0.0
    %451 = vmatpush1.msra.mxu0 %v437
    %452 = vmatprep.subr.mxu0 0.0
    %453 = vmatpush1.msra.mxu0 %v438
    %454 = vmatprep.subr.mxu0 0.0
    %455 = vmatpush1.msra.mxu0 0.0
    %456 = vmatprep.subr.mxu0 0.0
    %457 = vmatpush1.msra.mxu0 0.0
    %458 = vmatprep.subr.mxu0 0.0
    %459 = vmatpush1.msra.mxu0 0.0
    %460 = vmatprep.subr.mxu0 0.0
    %461 = vmatpush1.msra.mxu0 0.0
    %462 = vmatprep.subr.mxu0 0.0
    %463 = vmatpush1.msra.mxu0 0.0
    %464 = vmatprep.subr.mxu0 0.0
    %465 = vmatpush1.msra.mxu0 0.0
    %466 = vmatprep.subr.mxu0 0.0
    %467 = vmatpush1.msra.mxu0 0.0
    %468 = vmatprep.subr.mxu0 0.0
    %469 = vmatpush1.msra.mxu0 0.0
    %470 = vmatprep.subr.mxu0 0.0
    %471 = vmatpush1.msra.mxu0 0.0
    %472 = vmatprep.subr.mxu0 0.0
    %473 = vmatpush1.msra.mxu0 0.0
    %474 = vmatprep.subr.mxu0 0.0
    %475 = vmatpush1.msra.mxu0 0.0
    %476 = vmatprep.subr.mxu0 0.0
    %477 = vmatpush1.msra.mxu0 0.0
    %478 = vmatprep.subr.mxu0 0.0
    %479 = vmatpush1.msra.mxu0 0.0
    %480 = vmatprep.subr.mxu0 0.0
    %481 = vmatpush1.msra.mxu0 0.0
    %482 = vmatprep.subr.mxu0 0.0
    %483 = vmatpush1.msra.mxu0 0.0
    %484 = vmatprep.subr.mxu0 0.0
    %485 = vmatpush1.msra.mxu0 0.0
    %486 = vmatprep.subr.mxu0 0.0
    %487 = vmatpush1.msra.mxu0 0.0
    %488 = vmatprep.subr.mxu0 0.0
    %489 = vmatpush1.msra.mxu0 0.0
    %490 = vmatprep.subr.mxu0 0.0
    %491 = vmatpush1.msra.mxu0 0.0
    %492 = vmatprep.subr.mxu0 0.0
    %493 = vmatpush1.msra.mxu0 0.0
    %494 = vmatprep.subr.mxu0 0.0
    %495 = vmatpush1.msra.mxu0 0.0
    %496 = vmatprep.subr.mxu0 0.0
    %497 = vmatpush1.msra.mxu0 0.0
    %498 = vmatprep.subr.mxu0 0.0
    %499 = vmatpush1.msra.mxu0 0.0
    %500 = vmatprep.subr.mxu0 0.0
    %501 = vmatpush1.msra.mxu0 0.0
    %502 = vmatprep.subr.mxu0 0.0
    %503 = vmatpush1.msra.mxu0 0.0
    %504 = vmatprep.subr.mxu0 0.0
    %505 = vmatpush1.msra.mxu0 0.0
    %506 = vmatprep.subr.mxu0 0.0
    %507 = vmatpush1.msra.mxu0 0.0
    %508 = vmatprep.subr.mxu0 0.0
    %509 = vmatpush1.msra.mxu0 0.0
    %510 = vmatprep.mubr.f32.mxu0 0.0
    %511 = vmatmul.mubr.f32.gmra.mrb[0].mxu0 %v444
    %v512 = vpop.f32.mrb[0].mxu0
    %v513 = vadd.f32 %v441, %v512
    %v514 = vpop.f32.mrb[0].mxu0
    %515 = vdwg.mxu0
    %516 = vst [vmem:[#allocation3] sm:$0x1] %v513
    // Predicated region
    $region30: #{tpu_custom_call.1} parent=1 // pred_check
      _
    $region31: #{tpu_custom_call.1} parent=1 // pred_check_branch
      %518 = sbr.rel (0) target = $region33
    $region32: #{tpu_custom_call.1} parent=1 // pred_region
      %s520 = ssub.s32 16, 16
      %521 = vsyncadd [#allocation4], %s520
      %s523 = sshll.u32 [#allocation3], 4
      %s524 = int_to_ptr.vmem [resolvable:$true] %s523
      %526 = dma.vmem_to_hbm [thread:$0]  %s524, 16, %s7, [#allocation4]
    $region33: #{tpu_custom_call.1} parent=1 // pred_fallthru
      _
    // Predicated region
    $region34: #{tpu_custom_call.1} parent=1 // pred_check
      _
    $region35: #{tpu_custom_call.1} parent=1 // pred_check_branch
      %528 = sbr.rel (0) target = $region37
    $region36: #{tpu_custom_call.1} parent=1 // pred_region
      %529 = dma.done [#allocation4], 16
    $region37: #{tpu_custom_call.1} parent=1 // pred_fallthru
      _
    %530 = vsyncpa [#allocation4], 1

</llo_original>
